<compile_context>
chip_gen: v5e
topology: v5e:2x2
jax: 0.10.0
libtpu: 0.0.40
codegen_flags: <defaults>
</compile_context>

<pallas_src>
import functools

import jax
import jax.numpy as jnp
from jax.experimental import pallas as pl
from jax.experimental.pallas import tpu as pltpu


def _gumbel_noise_kernel(x_ref, u_bits_ref, b_bits_ref, o_ref, *, p, t, eps):
    # Uniform(0,1) from the top 24 bits of each uint32 draw (exact in f32).
    u24 = (u_bits_ref[...] >> 8).astype(jnp.int32)
    u = u24.astype(jnp.float32) * (1.0 / (1 << 24))

    # Logistic-like transform, fused into a single log:
    #   log(u + eps) - log(1 + eps - u) == log((u + eps) / (1 + eps - u))
    u = jnp.log((u + eps) / (1.0 + eps - u))

    # Bernoulli(p) via integer threshold on an independent draw
    # (compare raw bits, no float conversion / multiply for the mask).
    thr24 = int(round(p * (1 << 24)))  # static: p is a trace-time constant
    b24 = (b_bits_ref[...] >> 8).astype(jnp.int32)
    noise = jnp.where(b24 < thr24, u, 0.0)

    o_ref[...] = ((x_ref[...] + noise) * (1.0 / t)).astype(o_ref.dtype)


def _choose_block_rows(rows, hidden, target_block_bytes):
    """Pick a MiB-scale row tile (multiple of 8) covering the full hidden dim."""
    bytes_per_row = hidden * 4
    target_rows = max(8, (target_block_bytes // bytes_per_row) // 8 * 8)
    rows_rounded = ((rows + 7) // 8) * 8
    return int(min(target_rows, rows_rounded))


def gumbel_noise(x, key, *, p=0.5, t=1.0, eps=0.001, training=True,
                 target_block_bytes=2 << 20):
    """GumbelNoise forward (noise_type='new_U_B'). x: (batch, seq, hidden) f32."""
    if (not training) or p == 0.0:
        return x  # identity path, exactly like the PyTorch module
    # TODO(synk): noise_type 'new_U' / 'no_new' reuse stateful self.U / self.B
    # across calls; only the default 'new_U_B' path is implemented here.

    batch, seq, hidden = x.shape
    rows = batch * seq
    x2d = x.reshape(rows, hidden)

    block_rows = _choose_block_rows(rows, hidden, target_block_bytes)
    n_blocks = pl.cdiv(rows, block_rows)
    rows_padded = n_blocks * block_rows
    if rows_padded != rows:
        x2d = jnp.pad(x2d, ((0, rows_padded - rows), (0, 0)))

    # Independent raw-bit streams for U and B (generated at padded shape so
    # the random values do not depend on the tiling).
    k_u, k_b = jax.random.split(key)
    u_bits = jax.random.bits(k_u, (rows_padded, hidden), dtype=jnp.uint32)
    b_bits = jax.random.bits(k_b, (rows_padded, hidden), dtype=jnp.uint32)

    # VMEM budget: 4 arrays (x, u_bits, b_bits, out) x 2 buffers x tile_bytes.
    tile_bytes = block_rows * hidden * 4
    vmem_limit = int(min(max(8 * tile_bytes + (4 << 20), 16 << 20), 64 << 20))

    kernel = functools.partial(_gumbel_noise_kernel, p=p, t=t, eps=eps)
    blk = pl.BlockSpec((block_rows, hidden), lambda i: (i, 0))

    out2d = pl.pallas_call(
        kernel,
        out_shape=jax.ShapeDtypeStruct((rows_padded, hidden), x.dtype),
        grid=(n_blocks,),
        in_specs=[blk, blk, blk],
        out_specs=blk,
        compiler_params=pltpu.CompilerParams(
            dimension_semantics=("parallel",),
            vmem_limit_bytes=vmem_limit,
        ),
    )(x2d, u_bits, b_bits)

    if rows_padded != rows:
        out2d = out2d[:rows]
    return out2d.reshape(batch, seq, hidden)


if __name__ == "__main__":
    key = jax.random.PRNGKey(0)
    k_x, k_noise = jax.random.split(key)

    batch, seq, hidden = 2, 8, 32
    x = jax.random.normal(k_x, (batch, seq, hidden), dtype=jnp.float32)

    # Training mode with p > 0: noise is generated and applied in-kernel.
    out = gumbel_noise(x, k_noise, p=0.5, t=2.0, eps=0.001, training=True)
    out = jax.block_until_ready(out)
    assert out.shape == x.shape and out.dtype == x.dtype
    assert bool(jnp.all(jnp.isfinite(out)))

    # p = 1.0: every element gets noise; output must differ from x / t.
    out_p1 = gumbel_noise(x, k_noise, p=1.0, t=1.0, training=True)
    out_p1 = jax.block_until_ready(out_p1)
    assert not bool(jnp.allclose(out_p1, x))

    # Eval / p == 0 path: identity.
    out_eval = gumbel_noise(x, k_noise, p=0.5, training=False)
    out_eval = jax.block_until_ready(out_eval)
    assert jnp.array_equal(out_eval, x)

    print("KERNEL_OK")
</pallas_src>

<mosaic_0001>
module attributes {stable_mosaic.version = 11 : i64} {
  func.func @_gumbel_noise_kernel(%arg0: i32, %arg1: memref<16x32xf32, #tpu.memory_space<vmem>>, %arg2: memref<16x32xi32, #tpu.memory_space<vmem>>, %arg3: memref<16x32xi32, #tpu.memory_space<vmem>>, %arg4: memref<16x32xf32, #tpu.memory_space<vmem>>) attributes {dimension_semantics = [#tpu.dimension_semantics<parallel>], iteration_bounds = array<i64: 1>, scalar_prefetch = 0 : i64, scratch_operands = 0 : i64, tpu.core_type = #tpu.core_type<tc>, window_params = [{transform_indices = @transform_0, window_bounds = array<i64: 16, 32>}, {transform_indices = @transform_1, window_bounds = array<i64: 16, 32>}, {transform_indices = @transform_2, window_bounds = array<i64: 16, 32>}, {transform_indices = @transform_3, window_bounds = array<i64: 16, 32>}]} {
    %c0 = arith.constant 0 : index
    %c0_0 = arith.constant 0 : index
    %0 = vector.load %arg2[%c0, %c0_0] : memref<16x32xi32, #tpu.memory_space<vmem>>, vector<16x32xi32>
    %c8_i32 = arith.constant 8 : i32
    %1 = vector.broadcast %c8_i32 : i32 to vector<16x32xi32>
    %2 = arith.shrui %0, %1 : vector<16x32xi32>
    %3 = arith.sitofp %2 : vector<16x32xi32> to vector<16x32xf32>
    %cst = arith.constant 5.96046448E-8 : f32
    %4 = vector.broadcast %cst : f32 to vector<16x32xf32>
    %5 = arith.mulf %3, %4 : vector<16x32xf32>
    %cst_1 = arith.constant 1.000000e-03 : f32
    %6 = vector.broadcast %cst_1 : f32 to vector<16x32xf32>
    %7 = arith.addf %5, %6 : vector<16x32xf32>
    %cst_2 = arith.constant 1.001000e+00 : f32
    %8 = vector.broadcast %cst_2 : f32 to vector<16x32xf32>
    %9 = arith.subf %8, %5 : vector<16x32xf32>
    %10 = arith.divf %7, %9 : vector<16x32xf32>
    %11 = math.log %10 : vector<16x32xf32>
    %c0_3 = arith.constant 0 : index
    %c0_4 = arith.constant 0 : index
    %12 = vector.load %arg3[%c0_3, %c0_4] : memref<16x32xi32, #tpu.memory_space<vmem>>, vector<16x32xi32>
    %c8_i32_5 = arith.constant 8 : i32
    %13 = vector.broadcast %c8_i32_5 : i32 to vector<16x32xi32>
    %14 = arith.shrui %12, %13 : vector<16x32xi32>
    %c8388608_i32 = arith.constant 8388608 : i32
    %15 = vector.broadcast %c8388608_i32 : i32 to vector<16x32xi32>
    %16 = arith.cmpi slt, %14, %15 : vector<16x32xi32>
    %cst_6 = arith.constant 0.000000e+00 : f32
    %17 = vector.broadcast %cst_6 : f32 to vector<16x32xf32>
    %18 = arith.select %16, %11, %17 : vector<16x32xi1>, vector<16x32xf32>
    %c0_7 = arith.constant 0 : index
    %c0_8 = arith.constant 0 : index
    %19 = vector.load %arg1[%c0_7, %c0_8] : memref<16x32xf32, #tpu.memory_space<vmem>>, vector<16x32xf32>
    %20 = arith.addf %19, %18 : vector<16x32xf32>
    %cst_9 = arith.constant 5.000000e-01 : f32
    %21 = vector.broadcast %cst_9 : f32 to vector<16x32xf32>
    %22 = arith.mulf %20, %21 : vector<16x32xf32>
    %c0_10 = arith.constant 0 : index
    %c0_11 = arith.constant 0 : index
    %23 = vector.load %arg4[%c0_10, %c0_11] : memref<16x32xf32, #tpu.memory_space<vmem>>, vector<16x32xf32>
    tpu.vector_store %arg4[%c0_10, %c0_11], %22 {strides = array<i32>} : memref<16x32xf32, #tpu.memory_space<vmem>>, vector<16x32xf32>,
    return
  }
  func.func @transform_0(%arg0: i32) -> (i32, i32) {
    %c0_i32 = arith.constant 0 : i32
    %c0_i32_0 = arith.constant 0 : i32
    return %arg0, %c0_i32 : i32, i32
  }
  func.func @transform_1(%arg0: i32) -> (i32, i32) {
    %c0_i32 = arith.constant 0 : i32
    %c0_i32_0 = arith.constant 0 : i32
    return %arg0, %c0_i32 : i32, i32
  }
  func.func @transform_2(%arg0: i32) -> (i32, i32) {
    %c0_i32 = arith.constant 0 : i32
    %c0_i32_0 = arith.constant 0 : i32
    return %arg0, %c0_i32 : i32, i32
  }
  func.func @transform_3(%arg0: i32) -> (i32, i32) {
    %c0_i32 = arith.constant 0 : i32
    %c0_i32_0 = arith.constant 0 : i32
    return %arg0, %c0_i32 : i32, i32
  }
}

</mosaic_0001>

<llo_original>
// kernel: tpu_custom_call.1
$region0: #{tpu_custom_call.1}
  #allocation0 [shape = 'u32[]', space=smem, size = 0x4, offset = 0x4, fixed_abs, tag = 'smem constant byte address 0x4 - core index']
  #allocation1 [shape = 'u32[72,128]{1,0:T(1,128)}', space=vmem, size = 0x9000, scoped, tag = 'internal scratch']
  %s0 = inlined_call_operand.hbm [shape: f32[16,32], index: 0, kind: input, shape index: {}]
  %s1 = inlined_call_operand.hbm [shape: u32[16,32], index: 1, kind: input, shape index: {}]
  %s2 = inlined_call_operand.hbm [shape: u32[16,32], index: 2, kind: input, shape index: {}]
  %s3 = inlined_call_operand.hbm [shape: f32[16,32], index: 3, kind: output, shape index: {}]
  %s4 = sld [smem:[#allocation0]]
  $region34: #{tpu_custom_call.1} parent=0
    _
  %s6 = ssub.s32 1, %s4
  %s7 = scalar_select 0, %s6, %s4
  $region1: #{tpu_custom_call.1} parent=0
    #allocation2 [shape = 'u8[8192]{0}', space=vmem, size = 0x2000, scoped, tag = 'input window, operand 0, single buffered']
    #allocation3 [shape = 's32[1]{0}', space=sflag, size = 0x4, scoped, tag = 'scoped memory for tpu_custom_call.1']
    #allocation4 [shape = 's32[1]{0}', space=sflag, size = 0x4, scoped, tag = 'scoped memory for tpu_custom_call.1']
    #allocation5 [shape = 'u8[8192]{0}', space=vmem, size = 0x2000, scoped, tag = 'input window, operand 1, single buffered']
    #allocation6 [shape = 's32[1]{0}', space=sflag, size = 0x4, scoped, tag = 'scoped memory for tpu_custom_call.1']
    #allocation7 [shape = 'u8[8192]{0}', space=vmem, size = 0x2000, scoped, tag = 'input window, operand 2, single buffered']
    #allocation8 [shape = 'u8[8192]{0}', space=vmem, size = 0x2000, scoped, tag = 'output window, operand 0, single buffered']
    %8 = vsyncpa [#allocation3], 0
    %9 = vsyncpa [#allocation6], 0
    %10 = vsyncpa [#allocation4], 0
    // Predicated region
    $region2: #{tpu_custom_call.1} parent=1 // pred_check
      _
    $region3: #{tpu_custom_call.1} parent=1 // pred_check_branch
      %12 = sbr.rel (0) target = $region5
    $region4: #{tpu_custom_call.1} parent=1 // pred_region
      %14 = vsyncadd [#allocation3], 0
      %s15 = sshll.u32 %s0, 4
      %s16 = int_to_ptr.hbm [resolvable:$true] %s15
      %s17 = sshll.u32 [#allocation2], 4
      %s18 = int_to_ptr.vmem [resolvable:$true] %s17
      %23 = dma.hbm_to_vmem [thread:$0]  %s16, 256, %s18, [#allocation3], 128, 128, 8
    $region5: #{tpu_custom_call.1} parent=1 // pred_fallthru
      _
    // Predicated region
    $region6: #{tpu_custom_call.1} parent=1 // pred_check
      _
    $region7: #{tpu_custom_call.1} parent=1 // pred_check_branch
      %25 = sbr.rel (0) target = $region9
    $region8: #{tpu_custom_call.1} parent=1 // pred_region
      %27 = vsyncadd [#allocation6], 0
      %s28 = sshll.u32 %s1, 4
      %s29 = int_to_ptr.hbm [resolvable:$true] %s28
      %s30 = sshll.u32 [#allocation5], 4
      %s31 = int_to_ptr.vmem [resolvable:$true] %s30
      %36 = dma.hbm_to_vmem [thread:$0]  %s29, 256, %s31, [#allocation6], 128, 128, 8
    $region9: #{tpu_custom_call.1} parent=1 // pred_fallthru
      _
    // Predicated region
    $region10: #{tpu_custom_call.1} parent=1 // pred_check
      _
    $region11: #{tpu_custom_call.1} parent=1 // pred_check_branch
      %38 = sbr.rel (0) target = $region13
    $region12: #{tpu_custom_call.1} parent=1 // pred_region
      %40 = vsyncadd [#allocation6], 0
      %s41 = sshll.u32 %s2, 4
      %s42 = int_to_ptr.hbm [resolvable:$true] %s41
      %s43 = sshll.u32 [#allocation7], 4
      %s44 = int_to_ptr.vmem [resolvable:$true] %s43
      %49 = dma.hbm_to_vmem [thread:$0]  %s42, 256, %s44, [#allocation6], 128, 128, 8
    $region13: #{tpu_custom_call.1} parent=1 // pred_fallthru
      _
    // Predicated region
    $region14: #{tpu_custom_call.1} parent=1 // pred_check
      _
    $region15: #{tpu_custom_call.1} parent=1 // pred_check_branch
      %51 = sbr.rel (0) target = $region17
    $region16: #{tpu_custom_call.1} parent=1 // pred_region
      %53 = dma.done [#allocation3], 256
    $region17: #{tpu_custom_call.1} parent=1 // pred_fallthru
      _
    // Predicated region
    $region18: #{tpu_custom_call.1} parent=1 // pred_check
      _
    $region19: #{tpu_custom_call.1} parent=1 // pred_check_branch
      %55 = sbr.rel (0) target = $region21
    $region20: #{tpu_custom_call.1} parent=1 // pred_region
      %57 = dma.done [#allocation6], 256
    $region21: #{tpu_custom_call.1} parent=1 // pred_fallthru
      _
    // Predicated region
    $region22: #{tpu_custom_call.1} parent=1 // pred_check
      _
    $region23: #{tpu_custom_call.1} parent=1 // pred_check_branch
      %59 = sbr.rel (0) target = $region25
    $region24: #{tpu_custom_call.1} parent=1 // pred_region
      %61 = dma.done [#allocation6], 256
    $region25: #{tpu_custom_call.1} parent=1 // pred_fallthru
      _
    %v62 = vld [vmem:[#allocation5] sm:$0xff]
    %v63 = vld [vmem:[#allocation5 + $0x8] sm:$0xff]
    %v64 = vshrl.u32 %v62, 8
    %v65 = vshrl.u32 %v63, 8
    %v66 = vcvt.s32.f32 %v64
    %v67 = vcvt.s32.f32 %v65
    %v68 = vmul.f32 %v66, 5.9604645e-08
    %v69 = vmul.f32 %v67, 5.9604645e-08
    %v70 = vadd.f32 %v68, 0.001
    %v71 = vadd.f32 %v69, 0.001
    %v72 = vsub.f32 1.001, %v68
    %v73 = vsub.f32 1.001, %v69
    %v74 = vrcp.pop %v72
    %v75 = vmul.f32 %v72, %v74
    %v76 = vsub.f32 1.0, %v75
    %v77 = vmul.f32 %v74, %v76
    %v78 = vadd.f32 %v74, %v77
    %vm79 = vweird.f32 %v72
    %vm80 = vweird.f32 %v74
    %vm81 = vmor %vm79, %vm80
    %v82 = vsel %vm81, %v74, %v78
    %v83 = vand.u32 2147483647, %v72
    %vm84 = vcmp.eq.f32.partialorder %v83, 8.507059e+37
    %v85 = vand.u32 %v72, 2147483648
    %v86 = vor.u32 1.1754944e-38, %v85
    %v87 = vsel %vm84, %v86, %v82
    %v88 = vmul.f32 %v70, %v87
    %v89 = vrcp.pop %v73
    %v90 = vmul.f32 %v73, %v89
    %v91 = vsub.f32 1.0, %v90
    %v92 = vmul.f32 %v89, %v91
    %v93 = vadd.f32 %v89, %v92
    %vm94 = vweird.f32 %v73
    %vm95 = vweird.f32 %v89
    %vm96 = vmor %vm94, %vm95
    %v97 = vsel %vm96, %v89, %v93
    %v98 = vand.u32 2147483647, %v73
    %vm99 = vcmp.eq.f32.partialorder %v98, 8.507059e+37
    %v100 = vand.u32 %v73, 2147483648
    %v101 = vor.u32 1.1754944e-38, %v100
    %v102 = vsel %vm99, %v101, %v97
    %v103 = vmul.f32 %v71, %v102
    %v104 = vlog2.pop %v88
    %v105 = vmul.f32 %v104, 0.6931472
    %v106 = vlog2.pop %v103
    %v107 = vmul.f32 %v106, 0.6931472
    %v108 = vld [vmem:[#allocation7] sm:$0xff]
    %v109 = vld [vmem:[#allocation7 + $0x8] sm:$0xff]
    %v110 = vshrl.u32 %v108, 8
    %v111 = vshrl.u32 %v109, 8
    %vm112 = vcmp.lt.s32.totalorder %v110, 8388608
    %vm113 = vcmp.lt.s32.totalorder %v111, 8388608
    %v114 = vsel %vm112, %v105, 0.0
    %v115 = vsel %vm113, %v107, 0.0
    %v116 = vld [vmem:[#allocation2] sm:$0xff]
    %v117 = vld [vmem:[#allocation2 + $0x8] sm:$0xff]
    %v118 = vadd.f32 %v116, %v114
    %v119 = vadd.f32 %v117, %v115
    %v120 = vmul.f32 %v118, 0.5
    %v121 = vmul.f32 %v119, 0.5
    %vm122 = vcmask 261120
    %123 = vst.msk [vmem:[#allocation8] sm:$0xff] %vm122, %v120
    %124 = vst.msk [vmem:[#allocation8 + $0x8] sm:$0xff] %vm122, %v121
    // Predicated region
    $region26: #{tpu_custom_call.1} parent=1 // pred_check
      _
    $region27: #{tpu_custom_call.1} parent=1 // pred_check_branch
      %126 = sbr.rel (0) target = $region29
    $region28: #{tpu_custom_call.1} parent=1 // pred_region
      %128 = vsyncadd [#allocation4], 0
      %s129 = sshll.u32 [#allocation8], 4
      %s130 = int_to_ptr.vmem [resolvable:$true] %s129
      %s131 = sshll.u32 %s3, 4
      %s132 = int_to_ptr.hbm [resolvable:$true] %s131
      %137 = dma.vmem_to_hbm [thread:$0]  %s130, 256, %s132, [#allocation4], 128, 128, 8
    $region29: #{tpu_custom_call.1} parent=1 // pred_fallthru
      _
    // Predicated region
    $region30: #{tpu_custom_call.1} parent=1 // pred_check
      _
    $region31: #{tpu_custom_call.1} parent=1 // pred_check_branch
      %139 = sbr.rel (0) target = $region33
    $region32: #{tpu_custom_call.1} parent=1 // pred_region
      %141 = dma.done [#allocation4], 256
    $region33: #{tpu_custom_call.1} parent=1 // pred_fallthru
      _
    %142 = vsyncpa [#allocation3], 1
    %143 = vsyncpa [#allocation6], 1
    %144 = vsyncpa [#allocation4], 1

</llo_original>
